<compile_context>
chip_gen: v7x
topology: tpu7x:2x2x1
jax: 0.10.0
libtpu: 0.0.40
codegen_flags: <defaults>
</compile_context>

<pallas_src>
import functools

import jax
import jax.numpy as jnp
from jax.experimental import pallas as pl
from jax.experimental.pallas import tpu as pltpu


# -----------------------------------------------------------------------------
# Fused kernel: embedding + (conv + ReLU + global max-pool) x filters + FC.
# -----------------------------------------------------------------------------
def _textcnn_kernel(*refs, batch, seq_len, filter_sizes):
    n_conv = len(filter_sizes)
    tok_ref, table_ref = refs[0], refs[1]
    conv_refs = refs[2:2 + 2 * n_conv]
    fcw_ref, fcb_ref, out_ref = refs[2 + 2 * n_conv:2 + 2 * n_conv + 3]

    B, S = batch, seq_len
    BS = B * S
    V, E = table_ref.shape
    F = conv_refs[1].shape[1]
    mxu_dtype = table_ref.dtype

    # ---- Embedding lookup as a one-hot matmul on the MXU --------------------
    tok = tok_ref[...]                                            # (BS, 1) i32
    col = jax.lax.broadcasted_iota(jnp.int32, (BS, V), 1)
    onehot = jnp.where(col == tok, 1.0, 0.0).astype(mxu_dtype)    # (BS, V)
    emb = jnp.dot(onehot, table_ref[...],
                  preferred_element_type=jnp.float32)             # (BS, E) f32

    # ---- Shifted copies of the embedding slab for im2col --------------------
    # shifted[j][r] == emb[r + j]  (zero-padded tail; invalid rows masked below)
    max_k = max(filter_sizes)
    shifted = [emb]
    for j in range(1, max_k):
        shifted.append(jnp.concatenate(
            [emb[j:, :], jnp.zeros((j, E), emb.dtype)], axis=0))

    # ---- conv + bias + ReLU + global max-pool per filter size ---------------
    s_ids = jax.lax.broadcasted_iota(jnp.int32, (B, S, F), 1)
    pooled = []
    for idx, k in enumerate(filter_sizes):
        w_ref = conv_refs[2 * idx]            # (k*E, F)  bf16
        b_ref = conv_refs[2 * idx + 1]        # (1, F)    f32
        L = S - k + 1                         # valid conv positions per row
        x = jnp.concatenate(shifted[:k], axis=1).astype(mxu_dtype)   # (BS, k*E)
        acc = jnp.dot(x, w_ref[...],
                      preferred_element_type=jnp.float32)            # (BS, F)
        acc = jnp.maximum(acc + b_ref[...], 0.0)                      # bias+ReLU
        acc = acc.reshape(B, S, F)
        acc = jnp.where(s_ids < L, acc, -jnp.inf)   # mask windows past seq end
        pooled.append(jnp.max(acc, axis=1))                           # (B, F)

    feat = jnp.concatenate(pooled, axis=1)                            # (B, 3F)
    # Dropout(p=0.6) is identity at inference.
    # TODO(synk): training-mode dropout (random mask) not implemented.
    logits = jnp.dot(feat.astype(mxu_dtype), fcw_ref[...],
                     preferred_element_type=jnp.float32) + fcb_ref[...]
    out_ref[...] = logits.astype(out_ref.dtype)


def textcnn_forward(token_ids, params, filter_sizes):
    """token_ids: (B, S) int32 -> logits (B, C) f32, one fused pallas_call."""
    B, S = token_ids.shape
    C = params["fc_w"].shape[1]

    tok2 = token_ids.reshape(B * S, 1).astype(jnp.int32)

    operands = [tok2, params["embedding"]]
    for w, b in zip(params["conv_w"], params["conv_b"]):
        operands += [w, b]
    operands += [params["fc_w"], params["fc_b"]]

    def full_spec(shape):
        nd = len(shape)
        return pl.BlockSpec(shape, lambda i, _nd=nd: (0,) * _nd)

    kern = functools.partial(_textcnn_kernel, batch=B, seq_len=S,
                             filter_sizes=tuple(filter_sizes))
    return pl.pallas_call(
        kern,
        out_shape=jax.ShapeDtypeStruct((B, C), jnp.float32),
        grid=(1,),
        in_specs=[full_spec(op.shape) for op in operands],
        out_specs=full_spec((B, C)),
        compiler_params=pltpu.CompilerParams(
            dimension_semantics=("arbitrary",)),
    )(*operands)


# -----------------------------------------------------------------------------
# Parameters (kernel-ready layout) and a pure-JAX reference for validation.
# filter_sizes stays static Python config (never a pytree leaf).
# -----------------------------------------------------------------------------
def init_params(key, *, vocab, embed_dim, num_filters, filter_sizes, num_classes):
    n = len(filter_sizes)
    keys = jax.random.split(key, 3 + 2 * n)
    table = jax.random.normal(keys[0], (vocab, embed_dim), jnp.float32) * 0.1
    conv_w, conv_b = [], []
    for i, k in enumerate(filter_sizes):
        w = jax.random.normal(keys[1 + 2 * i], (k, embed_dim, num_filters),
                              jnp.float32) * 0.05
        b = jax.random.normal(keys[2 + 2 * i], (1, num_filters),
                              jnp.float32) * 0.01
        # (k, E, F) -> (k*E, F); bf16 MXU operand (f32 accumulation in-kernel).
        conv_w.append(w.reshape(k * embed_dim, num_filters).astype(jnp.bfloat16))
        conv_b.append(b)
    d = num_filters * n
    fc_w = jax.random.normal(keys[-2], (d, num_classes), jnp.float32) * 0.05
    fc_b = jax.random.normal(keys[-1], (1, num_classes), jnp.float32) * 0.01
    return {
        "embedding": table.astype(jnp.bfloat16),
        "conv_w": tuple(conv_w),
        "conv_b": tuple(conv_b),
        "fc_w": fc_w.astype(jnp.bfloat16),
        "fc_b": fc_b,
    }


def reference_forward(token_ids, params, filter_sizes):
    """Plain-JAX reference mirroring the kernel's precision choices."""
    B, S = token_ids.shape
    emb = jnp.take(params["embedding"], token_ids, axis=0).astype(jnp.float32)
    pooled = []
    for k, w, b in zip(filter_sizes, params["conv_w"], params["conv_b"]):
        L = S - k + 1
        x = jnp.concatenate([emb[:, j:j + L, :] for j in range(k)], axis=-1)
        acc = jnp.einsum("ble,ef->blf", x.astype(jnp.bfloat16), w,
                         preferred_element_type=jnp.float32) + b
        pooled.append(jnp.max(jnp.maximum(acc, 0.0), axis=1))
    feat = jnp.concatenate(pooled, axis=1)
    return jnp.dot(feat.astype(jnp.bfloat16), params["fc_w"],
                   preferred_element_type=jnp.float32) + params["fc_b"]


if __name__ == "__main__":
    # Small, deterministic shapes consistent with the module.
    B, S, E = 4, 16, 32           # batch, pad_size, embed_dim
    F_, C = 32, 4                 # num_filters, num_classes
    VOCAB = 100
    FILTER_SIZES = (2, 3, 4)

    key = jax.random.PRNGKey(0)
    k_tok, k_par = jax.random.split(key)
    token_ids = jax.random.randint(k_tok, (B, S), 0, VOCAB, dtype=jnp.int32)

    params = init_params(k_par, vocab=VOCAB, embed_dim=E, num_filters=F_,
                         filter_sizes=FILTER_SIZES, num_classes=C)

    out = textcnn_forward(token_ids, params, FILTER_SIZES)
    out = jax.block_until_ready(out)
    assert out.shape == (B, C), out.shape
    assert bool(jnp.all(jnp.isfinite(out)))

    ref = jax.block_until_ready(
        reference_forward(token_ids, params, FILTER_SIZES))
    max_err = float(jnp.max(jnp.abs(out - ref)))
    assert jnp.allclose(out, ref, atol=2e-2, rtol=2e-2), max_err

    print("KERNEL_OK")
</pallas_src>

<mosaic_0001>
module attributes {stable_mosaic.version = 11 : i64} {
  func.func @_textcnn_kernel(%arg0: i32, %arg1: memref<64x1xi32, #tpu.memory_space<vmem>>, %arg2: memref<100x32xbf16, #tpu.memory_space<vmem>>, %arg3: memref<64x32xbf16, #tpu.memory_space<vmem>>, %arg4: memref<1x32xf32, #tpu.memory_space<vmem>>, %arg5: memref<96x32xbf16, #tpu.memory_space<vmem>>, %arg6: memref<1x32xf32, #tpu.memory_space<vmem>>, %arg7: memref<128x32xbf16, #tpu.memory_space<vmem>>, %arg8: memref<1x32xf32, #tpu.memory_space<vmem>>, %arg9: memref<96x4xbf16, #tpu.memory_space<vmem>>, %arg10: memref<1x4xf32, #tpu.memory_space<vmem>>, %arg11: memref<4x4xf32, #tpu.memory_space<vmem>>) attributes {dimension_semantics = [#tpu.dimension_semantics<arbitrary>], iteration_bounds = array<i64: 1>, scalar_prefetch = 0 : i64, scratch_operands = 0 : i64, tpu.core_type = #tpu.core_type<tc>, window_params = [{pipeline_mode = #tpu.pipeline_mode<synchronous>, transform_indices = @transform_0, window_bounds = array<i64: 64, 1>}, {pipeline_mode = #tpu.pipeline_mode<synchronous>, transform_indices = @transform_1, window_bounds = array<i64: 100, 32>}, {pipeline_mode = #tpu.pipeline_mode<synchronous>, transform_indices = @transform_2, window_bounds = array<i64: 64, 32>}, {pipeline_mode = #tpu.pipeline_mode<synchronous>, transform_indices = @transform_3, window_bounds = array<i64: 1, 32>}, {pipeline_mode = #tpu.pipeline_mode<synchronous>, transform_indices = @transform_4, window_bounds = array<i64: 96, 32>}, {pipeline_mode = #tpu.pipeline_mode<synchronous>, transform_indices = @transform_5, window_bounds = array<i64: 1, 32>}, {pipeline_mode = #tpu.pipeline_mode<synchronous>, transform_indices = @transform_6, window_bounds = array<i64: 128, 32>}, {pipeline_mode = #tpu.pipeline_mode<synchronous>, transform_indices = @transform_7, window_bounds = array<i64: 1, 32>}, {pipeline_mode = #tpu.pipeline_mode<synchronous>, transform_indices = @transform_8, window_bounds = array<i64: 96, 4>}, {pipeline_mode = #tpu.pipeline_mode<synchronous>, transform_indices = @transform_9, window_bounds = array<i64: 1, 4>}, {pipeline_mode = #tpu.pipeline_mode<synchronous>, transform_indices = @transform_10, window_bounds = array<i64: 4, 4>}]} {
    %c0 = arith.constant 0 : index
    %c0_0 = arith.constant 0 : index
    %0 = vector.load %arg1[%c0, %c0_0] : memref<64x1xi32, #tpu.memory_space<vmem>>, vector<64x1xi32>
    %1 = tpu.iota {dimensions = array<i32: 1>} : vector<64x100xi32>
    %2 = vector.broadcast %0 : vector<64x1xi32> to vector<64x100xi32>
    %3 = arith.cmpi eq, %1, %2 : vector<64x100xi32>
    %cst = arith.constant 1.000000e+00 : f32
    %cst_1 = arith.constant 0.000000e+00 : f32
    %4 = vector.broadcast %cst : f32 to vector<64x100xf32>
    %5 = vector.broadcast %cst_1 : f32 to vector<64x100xf32>
    %6 = arith.select %3, %4, %5 : vector<64x100xi1>, vector<64x100xf32>
    %7 = arith.truncf %6 : vector<64x100xf32> to vector<64x100xbf16>
    %c0_2 = arith.constant 0 : index
    %c0_3 = arith.constant 0 : index
    %8 = vector.load %arg2[%c0_2, %c0_3] : memref<100x32xbf16, #tpu.memory_space<vmem>>, vector<100x32xbf16>
    %cst_4 = arith.constant dense<0.000000e+00> : vector<64x32xf32>
    %9 = tpu.matmul %7, %8, %cst_4 {dimension_numbers = #tpu.dot_dimension_numbers<[1], [0], [0], [1], [0, 0, 1, 1], [], []>} : vector<64x100xbf16>, vector<100x32xbf16>, vector<64x32xf32> -> vector<64x32xf32>
    %10 = vector.extract_strided_slice %9 {offsets = [1, 0], sizes = [63, 32], strides = [1, 1]} : vector<64x32xf32> to vector<63x32xf32>
    %cst_5 = arith.constant 0.000000e+00 : f32
    %11 = vector.broadcast %cst_5 : f32 to vector<1x32xf32>
    %12 = tpu.concatenate %10, %11 in 0 : vector<63x32xf32>, vector<1x32xf32> -> vector<64x32xf32>
    %13 = vector.extract_strided_slice %9 {offsets = [2, 0], sizes = [62, 32], strides = [1, 1]} : vector<64x32xf32> to vector<62x32xf32>
    %cst_6 = arith.constant 0.000000e+00 : f32
    %14 = vector.broadcast %cst_6 : f32 to vector<2x32xf32>
    %15 = tpu.concatenate %13, %14 in 0 : vector<62x32xf32>, vector<2x32xf32> -> vector<64x32xf32>
    %16 = vector.extract_strided_slice %9 {offsets = [3, 0], sizes = [61, 32], strides = [1, 1]} : vector<64x32xf32> to vector<61x32xf32>
    %cst_7 = arith.constant 0.000000e+00 : f32
    %17 = vector.broadcast %cst_7 : f32 to vector<3x32xf32>
    %18 = tpu.concatenate %16, %17 in 0 : vector<61x32xf32>, vector<3x32xf32> -> vector<64x32xf32>
    %19 = tpu.iota {dimensions = array<i32: 1>} : vector<4x16x32xi32>
    %20 = tpu.concatenate %9, %12 in 1 : vector<64x32xf32>, vector<64x32xf32> -> vector<64x64xf32>
    %21 = arith.truncf %20 : vector<64x64xf32> to vector<64x64xbf16>
    %c0_8 = arith.constant 0 : index
    %c0_9 = arith.constant 0 : index
    %22 = vector.load %arg3[%c0_8, %c0_9] : memref<64x32xbf16, #tpu.memory_space<vmem>>, vector<64x32xbf16>
    %cst_10 = arith.constant dense<0.000000e+00> : vector<64x32xf32>
    %23 = tpu.matmul %21, %22, %cst_10 {dimension_numbers = #tpu.dot_dimension_numbers<[1], [0], [0], [1], [0, 0, 1, 1], [], []>} : vector<64x64xbf16>, vector<64x32xbf16>, vector<64x32xf32> -> vector<64x32xf32>
    %c0_11 = arith.constant 0 : index
    %c0_12 = arith.constant 0 : index
    %24 = vector.load %arg4[%c0_11, %c0_12] : memref<1x32xf32, #tpu.memory_space<vmem>>, vector<1x32xf32>
    %25 = vector.broadcast %24 : vector<1x32xf32> to vector<64x32xf32>
    %26 = arith.addf %23, %25 : vector<64x32xf32>
    %cst_13 = arith.constant 0.000000e+00 : f32
    %27 = vector.broadcast %cst_13 : f32 to vector<64x32xf32>
    %28 = arith.maximumf %26, %27 : vector<64x32xf32>
    %29 = vector.shape_cast %28 : vector<64x32xf32> to vector<4x16x32xf32>
    %c15_i32 = arith.constant 15 : i32
    %30 = vector.broadcast %c15_i32 : i32 to vector<4x16x32xi32>
    %31 = arith.cmpi slt, %19, %30 : vector<4x16x32xi32>
    %cst_14 = arith.constant 0xFF800000 : f32
    %32 = vector.broadcast %cst_14 : f32 to vector<4x16x32xf32>
    %33 = arith.select %31, %29, %32 : vector<4x16x32xi1>, vector<4x16x32xf32>
    %cst_15 = arith.constant dense<0xFF800000> : vector<4x32xf32>
    %34 = vector.multi_reduction <maximumf>, %33, %cst_15 [1] : vector<4x16x32xf32> to vector<4x32xf32>
    %35 = tpu.concatenate %9, %12, %15 in 1 : vector<64x32xf32>, vector<64x32xf32>, vector<64x32xf32> -> vector<64x96xf32>
    %36 = arith.truncf %35 : vector<64x96xf32> to vector<64x96xbf16>
    %c0_16 = arith.constant 0 : index
    %c0_17 = arith.constant 0 : index
    %37 = vector.load %arg5[%c0_16, %c0_17] : memref<96x32xbf16, #tpu.memory_space<vmem>>, vector<96x32xbf16>
    %cst_18 = arith.constant dense<0.000000e+00> : vector<64x32xf32>
    %38 = tpu.matmul %36, %37, %cst_18 {dimension_numbers = #tpu.dot_dimension_numbers<[1], [0], [0], [1], [0, 0, 1, 1], [], []>} : vector<64x96xbf16>, vector<96x32xbf16>, vector<64x32xf32> -> vector<64x32xf32>
    %c0_19 = arith.constant 0 : index
    %c0_20 = arith.constant 0 : index
    %39 = vector.load %arg6[%c0_19, %c0_20] : memref<1x32xf32, #tpu.memory_space<vmem>>, vector<1x32xf32>
    %40 = vector.broadcast %39 : vector<1x32xf32> to vector<64x32xf32>
    %41 = arith.addf %38, %40 : vector<64x32xf32>
    %cst_21 = arith.constant 0.000000e+00 : f32
    %42 = vector.broadcast %cst_21 : f32 to vector<64x32xf32>
    %43 = arith.maximumf %41, %42 : vector<64x32xf32>
    %44 = vector.shape_cast %43 : vector<64x32xf32> to vector<4x16x32xf32>
    %c14_i32 = arith.constant 14 : i32
    %45 = vector.broadcast %c14_i32 : i32 to vector<4x16x32xi32>
    %46 = arith.cmpi slt, %19, %45 : vector<4x16x32xi32>
    %cst_22 = arith.constant 0xFF800000 : f32
    %47 = vector.broadcast %cst_22 : f32 to vector<4x16x32xf32>
    %48 = arith.select %46, %44, %47 : vector<4x16x32xi1>, vector<4x16x32xf32>
    %cst_23 = arith.constant dense<0xFF800000> : vector<4x32xf32>
    %49 = vector.multi_reduction <maximumf>, %48, %cst_23 [1] : vector<4x16x32xf32> to vector<4x32xf32>
    %50 = tpu.concatenate %9, %12, %15, %18 in 1 : vector<64x32xf32>, vector<64x32xf32>, vector<64x32xf32>, vector<64x32xf32> -> vector<64x128xf32>
    %51 = arith.truncf %50 : vector<64x128xf32> to vector<64x128xbf16>
    %c0_24 = arith.constant 0 : index
    %c0_25 = arith.constant 0 : index
    %52 = vector.load %arg7[%c0_24, %c0_25] : memref<128x32xbf16, #tpu.memory_space<vmem>>, vector<128x32xbf16>
    %cst_26 = arith.constant dense<0.000000e+00> : vector<64x32xf32>
    %53 = tpu.matmul %51, %52, %cst_26 {dimension_numbers = #tpu.dot_dimension_numbers<[1], [0], [0], [1], [0, 0, 1, 1], [], []>} : vector<64x128xbf16>, vector<128x32xbf16>, vector<64x32xf32> -> vector<64x32xf32>
    %c0_27 = arith.constant 0 : index
    %c0_28 = arith.constant 0 : index
    %54 = vector.load %arg8[%c0_27, %c0_28] : memref<1x32xf32, #tpu.memory_space<vmem>>, vector<1x32xf32>
    %55 = vector.broadcast %54 : vector<1x32xf32> to vector<64x32xf32>
    %56 = arith.addf %53, %55 : vector<64x32xf32>
    %cst_29 = arith.constant 0.000000e+00 : f32
    %57 = vector.broadcast %cst_29 : f32 to vector<64x32xf32>
    %58 = arith.maximumf %56, %57 : vector<64x32xf32>
    %59 = vector.shape_cast %58 : vector<64x32xf32> to vector<4x16x32xf32>
    %c13_i32 = arith.constant 13 : i32
    %60 = vector.broadcast %c13_i32 : i32 to vector<4x16x32xi32>
    %61 = arith.cmpi slt, %19, %60 : vector<4x16x32xi32>
    %cst_30 = arith.constant 0xFF800000 : f32
    %62 = vector.broadcast %cst_30 : f32 to vector<4x16x32xf32>
    %63 = arith.select %61, %59, %62 : vector<4x16x32xi1>, vector<4x16x32xf32>
    %cst_31 = arith.constant dense<0xFF800000> : vector<4x32xf32>
    %64 = vector.multi_reduction <maximumf>, %63, %cst_31 [1] : vector<4x16x32xf32> to vector<4x32xf32>
    %65 = tpu.concatenate %34, %49, %64 in 1 : vector<4x32xf32>, vector<4x32xf32>, vector<4x32xf32> -> vector<4x96xf32>
    %66 = arith.truncf %65 : vector<4x96xf32> to vector<4x96xbf16>
    %c0_32 = arith.constant 0 : index
    %c0_33 = arith.constant 0 : index
    %67 = vector.load %arg9[%c0_32, %c0_33] : memref<96x4xbf16, #tpu.memory_space<vmem>>, vector<96x4xbf16>
    %cst_34 = arith.constant dense<0.000000e+00> : vector<4x4xf32>
    %68 = tpu.matmul %66, %67, %cst_34 {dimension_numbers = #tpu.dot_dimension_numbers<[1], [0], [0], [1], [0, 0, 1, 1], [], []>} : vector<4x96xbf16>, vector<96x4xbf16>, vector<4x4xf32> -> vector<4x4xf32>
    %c0_35 = arith.constant 0 : index
    %c0_36 = arith.constant 0 : index
    %69 = vector.load %arg10[%c0_35, %c0_36] : memref<1x4xf32, #tpu.memory_space<vmem>>, vector<1x4xf32>
    %70 = vector.broadcast %69 : vector<1x4xf32> to vector<4x4xf32>
    %71 = arith.addf %68, %70 : vector<4x4xf32>
    %c0_37 = arith.constant 0 : index
    %c0_38 = arith.constant 0 : index
    %72 = vector.load %arg11[%c0_37, %c0_38] : memref<4x4xf32, #tpu.memory_space<vmem>>, vector<4x4xf32>
    tpu.vector_store %arg11[%c0_37, %c0_38], %71 {strides = array<i32>} : memref<4x4xf32, #tpu.memory_space<vmem>>, vector<4x4xf32>,
    return
  }
  func.func @transform_0(%arg0: i32) -> (i32, i32) {
    %c0_i32 = arith.constant 0 : i32
    %c0_i32_0 = arith.constant 0 : i32
    %c0_i32_1 = arith.constant 0 : i32
    return %c0_i32, %c0_i32_0 : i32, i32
  }
  func.func @transform_1(%arg0: i32) -> (i32, i32) {
    %c0_i32 = arith.constant 0 : i32
    %c0_i32_0 = arith.constant 0 : i32
    %c0_i32_1 = arith.constant 0 : i32
    return %c0_i32, %c0_i32_0 : i32, i32
  }
  func.func @transform_2(%arg0: i32) -> (i32, i32) {
    %c0_i32 = arith.constant 0 : i32
    %c0_i32_0 = arith.constant 0 : i32
    %c0_i32_1 = arith.constant 0 : i32
    return %c0_i32, %c0_i32_0 : i32, i32
  }
  func.func @transform_3(%arg0: i32) -> (i32, i32) {
    %c0_i32 = arith.constant 0 : i32
    %c0_i32_0 = arith.constant 0 : i32
    %c0_i32_1 = arith.constant 0 : i32
    return %c0_i32, %c0_i32_0 : i32, i32
  }
  func.func @transform_4(%arg0: i32) -> (i32, i32) {
    %c0_i32 = arith.constant 0 : i32
    %c0_i32_0 = arith.constant 0 : i32
    %c0_i32_1 = arith.constant 0 : i32
    return %c0_i32, %c0_i32_0 : i32, i32
  }
  func.func @transform_5(%arg0: i32) -> (i32, i32) {
    %c0_i32 = arith.constant 0 : i32
    %c0_i32_0 = arith.constant 0 : i32
    %c0_i32_1 = arith.constant 0 : i32
    return %c0_i32, %c0_i32_0 : i32, i32
  }
  func.func @transform_6(%arg0: i32) -> (i32, i32) {
    %c0_i32 = arith.constant 0 : i32
    %c0_i32_0 = arith.constant 0 : i32
    %c0_i32_1 = arith.constant 0 : i32
    return %c0_i32, %c0_i32_0 : i32, i32
  }
  func.func @transform_7(%arg0: i32) -> (i32, i32) {
    %c0_i32 = arith.constant 0 : i32
    %c0_i32_0 = arith.constant 0 : i32
    %c0_i32_1 = arith.constant 0 : i32
    return %c0_i32, %c0_i32_0 : i32, i32
  }
  func.func @transform_8(%arg0: i32) -> (i32, i32) {
    %c0_i32 = arith.constant 0 : i32
    %c0_i32_0 = arith.constant 0 : i32
    %c0_i32_1 = arith.constant 0 : i32
    return %c0_i32, %c0_i32_0 : i32, i32
  }
  func.func @transform_9(%arg0: i32) -> (i32, i32) {
    %c0_i32 = arith.constant 0 : i32
    %c0_i32_0 = arith.constant 0 : i32
    %c0_i32_1 = arith.constant 0 : i32
    return %c0_i32, %c0_i32_0 : i32, i32
  }
  func.func @transform_10(%arg0: i32) -> (i32, i32) {
    %c0_i32 = arith.constant 0 : i32
    %c0_i32_0 = arith.constant 0 : i32
    %c0_i32_1 = arith.constant 0 : i32
    return %c0_i32, %c0_i32_0 : i32, i32
  }
}

</mosaic_0001>

<llo_original>
// kernel: tpu_custom_call.1
$region0: #{tpu_custom_call.1}
  #allocation0 [shape = 'u32[]', space=smem, size = 0x4, offset = 0x4, fixed_abs, tag = 'smem constant byte address 0x4 - core index']
  #allocation1 [shape = 'u32[144,128]{1,0:T(1,128)}', space=vmem, size = 0x12000, scoped, tag = 'internal scratch']
  %s0 = inlined_call_operand.vmem [shape: s32[64,1], index: 0, kind: input, shape index: {}]
  %s1 = inlined_call_operand.vmem [shape: bf16[100,32], index: 1, kind: input, shape index: {}]
  %s2 = inlined_call_operand.vmem [shape: bf16[64,32], index: 2, kind: input, shape index: {}]
  %s3 = inlined_call_operand.vmem [shape: f32[1,32], index: 3, kind: input, shape index: {}]
  %s4 = inlined_call_operand.vmem [shape: bf16[96,32], index: 4, kind: input, shape index: {}]
  %s5 = inlined_call_operand.vmem [shape: f32[1,32], index: 5, kind: input, shape index: {}]
  %s6 = inlined_call_operand.vmem [shape: bf16[128,32], index: 6, kind: input, shape index: {}]
  %s7 = inlined_call_operand.vmem [shape: f32[1,32], index: 7, kind: input, shape index: {}]
  %s8 = inlined_call_operand.vmem [shape: bf16[96,4], index: 8, kind: input, shape index: {}]
  %s9 = inlined_call_operand.vmem [shape: f32[1,4], index: 9, kind: input, shape index: {}]
  %s10 = inlined_call_operand.hbm [shape: f32[4,4], index: 10, kind: output, shape index: {}]
  %s11 = sld [smem:[#allocation0]]
  $region50: #{tpu_custom_call.1} parent=0
    _
  %s13 = ssub.s32 1, %s11
  %s14 = scalar_select 0, %s13, %s11
  $region1: #{tpu_custom_call.1} parent=0
    #allocation2 [shape = 'u8[2048]{0}', space=vmem, size = 0x800, scoped, tag = 'output window, operand 0, single buffered']
    #allocation3 [shape = 's32[1]{0}', space=sflag, size = 0x4, scoped, tag = 'scoped memory for tpu_custom_call.1']
    %15 = vsyncpa [#allocation3], 0
    // Predicated region
    $region2: #{tpu_custom_call.1} parent=1 // pred_check
      _
    $region3: #{tpu_custom_call.1} parent=1 // pred_check_branch
      %17 = sbr.rel (0) target = $region5
    $region4: #{tpu_custom_call.1} parent=1 // pred_region
      _
    $region5: #{tpu_custom_call.1} parent=1 // pred_fallthru
      _
    // Predicated region
    $region6: #{tpu_custom_call.1} parent=1 // pred_check
      _
    $region7: #{tpu_custom_call.1} parent=1 // pred_check_branch
      %19 = sbr.rel (0) target = $region9
    $region8: #{tpu_custom_call.1} parent=1 // pred_region
      _
    $region9: #{tpu_custom_call.1} parent=1 // pred_fallthru
      _
    // Predicated region
    $region10: #{tpu_custom_call.1} parent=1 // pred_check
      _
    $region11: #{tpu_custom_call.1} parent=1 // pred_check_branch
      %21 = sbr.rel (0) target = $region13
    $region12: #{tpu_custom_call.1} parent=1 // pred_region
      _
    $region13: #{tpu_custom_call.1} parent=1 // pred_fallthru
      _
    // Predicated region
    $region14: #{tpu_custom_call.1} parent=1 // pred_check
      _
    $region15: #{tpu_custom_call.1} parent=1 // pred_check_branch
      %23 = sbr.rel (0) target = $region17
    $region16: #{tpu_custom_call.1} parent=1 // pred_region
      _
    $region17: #{tpu_custom_call.1} parent=1 // pred_fallthru
      _
    // Predicated region
    $region18: #{tpu_custom_call.1} parent=1 // pred_check
      _
    $region19: #{tpu_custom_call.1} parent=1 // pred_check_branch
      %25 = sbr.rel (0) target = $region21
    $region20: #{tpu_custom_call.1} parent=1 // pred_region
      _
    $region21: #{tpu_custom_call.1} parent=1 // pred_fallthru
      _
    // Predicated region
    $region22: #{tpu_custom_call.1} parent=1 // pred_check
      _
    $region23: #{tpu_custom_call.1} parent=1 // pred_check_branch
      %27 = sbr.rel (0) target = $region25
    $region24: #{tpu_custom_call.1} parent=1 // pred_region
      _
    $region25: #{tpu_custom_call.1} parent=1 // pred_fallthru
      _
    // Predicated region
    $region26: #{tpu_custom_call.1} parent=1 // pred_check
      _
    $region27: #{tpu_custom_call.1} parent=1 // pred_check_branch
      %29 = sbr.rel (0) target = $region29
    $region28: #{tpu_custom_call.1} parent=1 // pred_region
      _
    $region29: #{tpu_custom_call.1} parent=1 // pred_fallthru
      _
    // Predicated region
    $region30: #{tpu_custom_call.1} parent=1 // pred_check
      _
    $region31: #{tpu_custom_call.1} parent=1 // pred_check_branch
      %31 = sbr.rel (0) target = $region33
    $region32: #{tpu_custom_call.1} parent=1 // pred_region
      _
    $region33: #{tpu_custom_call.1} parent=1 // pred_fallthru
      _
    // Predicated region
    $region34: #{tpu_custom_call.1} parent=1 // pred_check
      _
    $region35: #{tpu_custom_call.1} parent=1 // pred_check_branch
      %33 = sbr.rel (0) target = $region37
    $region36: #{tpu_custom_call.1} parent=1 // pred_region
      _
    $region37: #{tpu_custom_call.1} parent=1 // pred_fallthru
      _
    // Predicated region
    $region38: #{tpu_custom_call.1} parent=1 // pred_check
      _
    $region39: #{tpu_custom_call.1} parent=1 // pred_check_branch
      %35 = sbr.rel (0) target = $region41
    $region40: #{tpu_custom_call.1} parent=1 // pred_region
      _
    $region41: #{tpu_custom_call.1} parent=1 // pred_fallthru
      _
    %v37 = vld [vmem:[%s0] sm:$0xff]
    %v38 = vld [vmem:[%s0 + $0x8] sm:$0xff]
    %v39 = vld [vmem:[%s0 + $0x10] sm:$0xff]
    %v40 = vld [vmem:[%s0 + $0x18] sm:$0xff]
    %v41 = vld [vmem:[%s0 + $0x20] sm:$0xff]
    %v42 = vld [vmem:[%s0 + $0x28] sm:$0xff]
    %v43 = vld [vmem:[%s0 + $0x30] sm:$0xff]
    %v44 = vld [vmem:[%s0 + $0x38] sm:$0xff]
    %v45 = vlaneseq
    %v46 = vand.u32 %v45, 127
    %47 = vset.pattern.permute.xlu0 0
    %48 = vperm.xlu0 %47, %v37
    %v49 = vpop.permute.xlu0 %48
    %50 = vset.pattern.permute.xlu0 0
    %51 = vperm.xlu0 %50, %v38
    %v52 = vpop.permute.xlu0 %51
    %53 = vset.pattern.permute.xlu0 0
    %54 = vperm.xlu0 %53, %v39
    %v55 = vpop.permute.xlu0 %54
    %56 = vset.pattern.permute.xlu0 0
    %57 = vperm.xlu0 %56, %v40
    %v58 = vpop.permute.xlu0 %57
    %59 = vset.pattern.permute.xlu0 0
    %60 = vperm.xlu0 %59, %v41
    %v61 = vpop.permute.xlu0 %60
    %62 = vset.pattern.permute.xlu0 0
    %63 = vperm.xlu0 %62, %v42
    %v64 = vpop.permute.xlu0 %63
    %65 = vset.pattern.permute.xlu0 0
    %66 = vperm.xlu0 %65, %v43
    %v67 = vpop.permute.xlu0 %66
    %68 = vset.pattern.permute.xlu0 0
    %69 = vperm.xlu0 %68, %v44
    %v70 = vpop.permute.xlu0 %69
    %vm71 = vcmp.eq.s32.totalorder %v46, %v49
    %vm72 = vcmp.eq.s32.totalorder %v46, %v52
    %vm73 = vcmp.eq.s32.totalorder %v46, %v55
    %vm74 = vcmp.eq.s32.totalorder %v46, %v58
    %vm75 = vcmp.eq.s32.totalorder %v46, %v61
    %vm76 = vcmp.eq.s32.totalorder %v46, %v64
    %vm77 = vcmp.eq.s32.totalorder %v46, %v67
    %vm78 = vcmp.eq.s32.totalorder %v46, %v70
    %v79 = vsel %vm71, 1.0, 0.0
    %v80 = vsel %vm72, 1.0, 0.0
    %v81 = vsel %vm73, 1.0, 0.0
    %v82 = vsel %vm74, 1.0, 0.0
    %v83 = vsel %vm75, 1.0, 0.0
    %v84 = vsel %vm76, 1.0, 0.0
    %v85 = vsel %vm77, 1.0, 0.0
    %v86 = vsel %vm78, 1.0, 0.0
    %v87 = vpack.c.bf16 %v80, %v79
    %v88 = vpack.c.bf16 %v82, %v81
    %v89 = vpack.c.bf16 %v84, %v83
    %v90 = vpack.c.bf16 %v86, %v85
    %v91 = vld [vmem:[%s1] sm:$0xf]
    %v92 = vld [vmem:[%s1 + $0x4] sm:$0xf]
    %v93 = vld [vmem:[%s1 + $0x8] sm:$0xf]
    %v94 = vld [vmem:[%s1 + $0xc] sm:$0xf]
    %v95 = vld [vmem:[%s1 + $0x10] sm:$0xf]
    %v96 = vld [vmem:[%s1 + $0x14] sm:$0xf]
    %v97 = vld [vmem:[%s1 + $0x18] sm:$0xf]
    %v98 = vld [vmem:[%s1 + $0x1c] sm:$0xf]
    %v99 = vld [vmem:[%s1 + $0x20] sm:$0xf]
    %v100 = vld [vmem:[%s1 + $0x24] sm:$0xf]
    %v101 = vld [vmem:[%s1 + $0x28] sm:$0xf]
    %v102 = vld [vmem:[%s1 + $0x2c] sm:$0xf]
    %v103 = vld [vmem:[%s1 + $0x30] sm:$0x3]
    %v117 = vunpack.c.l.b16 %v91
    %v118 = vunpack.c.l.b16 %v92
    %v119 = vunpack.c.l.b16 %v93
    %v120 = vunpack.c.l.b16 %v94
    %v121 = vunpack.c.l.b16 %v95
    %v122 = vunpack.c.l.b16 %v96
    %v123 = vunpack.c.l.b16 %v97
    %v124 = vunpack.c.l.b16 %v98
    %v125 = vunpack.c.l.b16 %v99
    %v126 = vunpack.c.l.b16 %v100
    %v127 = vunpack.c.l.b16 %v101
    %v128 = vunpack.c.l.b16 %v102
    %v129 = vunpack.c.l.b16 %v103
    %v130 = vpack.c.b16 %v118, %v117
    %v131 = vpack.c.b16 %v120, %v119
    %v132 = vpack.c.b16 %v122, %v121
    %v133 = vpack.c.b16 %v124, %v123
    %v134 = vpack.c.b16 %v126, %v125
    %v135 = vpack.c.b16 %v128, %v127
    %v136 = vpack.c.b16 %v129, %v129
    %vm143 = vcmask 818176
    %v145 = vsel %vm143, %v87, 0
    %v148 = vsel %vm143, %v88, 0
    %v151 = vsel %vm143, %v89, 0
    %v154 = vsel %vm143, %v90, 0
    %vm156 = vcmask 1041408
    %v158 = vsel %vm156, %v136, 0
    %160 = vmatprep.subr.bf16.mxu0 0
    %161 = vmatpush1.bf16.msra.mxu0 %v130
    %162 = vmatprep.subr.bf16.mxu0 0
    %163 = vmatpush1.bf16.msra.mxu0 %v131
    %164 = vmatprep.subr.bf16.mxu0 0
    %165 = vmatpush1.bf16.msra.mxu0 %v132
    %166 = vmatprep.subr.bf16.mxu0 0
    %167 = vmatpush1.bf16.msra.mxu0 %v133
    %168 = vmatprep.subr.bf16.mxu0 0
    %169 = vmatpush1.bf16.msra.mxu0 %v134
    %170 = vmatprep.subr.bf16.mxu0 0
    %171 = vmatpush1.bf16.msra.mxu0 %v135
    %172 = vmatprep.subr.bf16.mxu0 0
    %173 = vmatpush1.bf16.msra.mxu0 %v158
    %174 = vmatprep.subr.bf16.mxu0 0
    %175 = vmatpush1.bf16.msra.mxu0 0
    %176 = vmatprep.subr.bf16.mxu0 0
    %177 = vmatpush1.bf16.msra.mxu0 0
    %178 = vmatprep.subr.bf16.mxu0 0
    %179 = vmatpush1.bf16.msra.mxu0 0
    %180 = vmatprep.subr.bf16.mxu0 0
    %181 = vmatpush1.bf16.msra.mxu0 0
    %182 = vmatprep.subr.bf16.mxu0 0
    %183 = vmatpush1.bf16.msra.mxu0 0
    %184 = vmatprep.subr.bf16.mxu0 0
    %185 = vmatpush1.bf16.msra.mxu0 0
    %186 = vmatprep.subr.bf16.mxu0 0
    %187 = vmatpush1.bf16.msra.mxu0 0
    %188 = vmatprep.subr.bf16.mxu0 0
    %189 = vmatpush1.bf16.msra.mxu0 0
    %190 = vmatprep.subr.bf16.mxu0 0
    %191 = vmatpush1.bf16.msra.mxu0 0
    %192 = vmatprep.mubr.bf16.mxu0 0
    %193 = vmatmul.mubr.bf16.gmra.mrb[0].mxu0 %v145
    %v194 = vpop.f32.mrb[0].mxu0
    %v195 = vadd.f32 0.0, %v194
    %v196 = vpop.f32.mrb[0].mxu0
    %v197 = vpop.f32.mrb[0].mxu0
    %v198 = vadd.f32 0.0, %v197
    %v199 = vpop.f32.mrb[0].mxu0
    %200 = vmatprep.mubr.bf16.mxu0 0
    %201 = vmatmul.mubr.bf16.gmra.mrb[0].mxu0 %v148
    %v202 = vpop.f32.mrb[0].mxu0
    %v203 = vadd.f32 0.0, %v202
    %v204 = vpop.f32.mrb[0].mxu0
    %v205 = vpop.f32.mrb[0].mxu0
    %v206 = vadd.f32 0.0, %v205
    %v207 = vpop.f32.mrb[0].mxu0
    %208 = vmatprep.mubr.bf16.mxu0 0
    %209 = vmatmul.mubr.bf16.gmra.mrb[0].mxu0 %v151
    %v210 = vpop.f32.mrb[0].mxu0
    %v211 = vadd.f32 0.0, %v210
    %v212 = vpop.f32.mrb[0].mxu0
    %v213 = vpop.f32.mrb[0].mxu0
    %v214 = vadd.f32 0.0, %v213
    %v215 = vpop.f32.mrb[0].mxu0
    %216 = vmatprep.mubr.bf16.mxu0 0
    %217 = vmatmul.mubr.bf16.gmra.mrb[0].mxu0 %v154
    %v218 = vpop.f32.mrb[0].mxu0
    %v219 = vadd.f32 0.0, %v218
    %v220 = vpop.f32.mrb[0].mxu0
    %v221 = vpop.f32.mrb[0].mxu0
    %v222 = vadd.f32 0.0, %v221
    %v223 = vpop.f32.mrb[0].mxu0
    %224 = vdwg.mxu0
    %vm233 = vcmask 1046528
    %v234 = vrot.slane %v195, 1
    %v235 = vrot.slane %v198, 1
    %v236 = vsel %vm233, %v234, %v235
    %v237 = vrot.slane %v203, 1
    %v238 = vsel %vm233, %v235, %v237
    %v239 = vrot.slane %v206, 1
    %v240 = vsel %vm233, %v237, %v239
    %v241 = vrot.slane %v211, 1
    %v242 = vsel %vm233, %v239, %v241
    %v243 = vrot.slane %v214, 1
    %v244 = vsel %vm233, %v241, %v243
    %v245 = vrot.slane %v219, 1
    %v246 = vsel %vm233, %v243, %v245
    %v247 = vrot.slane %v222, 1
    %v248 = vsel %vm233, %v245, %v247
    %v250 = vsel %vm233, %v247, 0.0
    %vm251 = vcmask 1045504
    %v252 = vrot.slane %v195, 2
    %v253 = vrot.slane %v198, 2
    %v254 = vsel %vm251, %v252, %v253
    %v255 = vrot.slane %v203, 2
    %v256 = vsel %vm251, %v253, %v255
    %v257 = vrot.slane %v206, 2
    %v258 = vsel %vm251, %v255, %v257
    %v259 = vrot.slane %v211, 2
    %v260 = vsel %vm251, %v257, %v259
    %v261 = vrot.slane %v214, 2
    %v262 = vsel %vm251, %v259, %v261
    %v263 = vrot.slane %v219, 2
    %v264 = vsel %vm251, %v261, %v263
    %v265 = vrot.slane %v222, 2
    %v266 = vsel %vm251, %v263, %v265
    %v268 = vsel %vm251, %v265, 0.0
    %vm269 = vcmask 1044480
    %v270 = vrot.slane %v195, 3
    %v271 = vrot.slane %v198, 3
    %v272 = vsel %vm269, %v270, %v271
    %v273 = vrot.slane %v203, 3
    %v274 = vsel %vm269, %v271, %v273
    %v275 = vrot.slane %v206, 3
    %v276 = vsel %vm269, %v273, %v275
    %v277 = vrot.slane %v211, 3
    %v278 = vsel %vm269, %v275, %v277
    %v279 = vrot.slane %v214, 3
    %v280 = vsel %vm269, %v277, %v279
    %v281 = vrot.slane %v219, 3
    %v282 = vsel %vm269, %v279, %v281
    %v283 = vrot.slane %v222, 3
    %v284 = vsel %vm269, %v281, %v283
    %v286 = vsel %vm269, %v283, 0.0
    %v287 = vlaneseq
    %v288 = vshrl.u32 %v287, 7
    %v289 = vadd.s32 %v288, 8
    %291 = vrot.lane.b32.xlu0 %v236, 32
    %v292 = vpop.permute.xlu0 %291
    %293 = vrot.lane.b32.xlu0 %v238, 32
    %v294 = vpop.permute.xlu0 %293
    %295 = vrot.lane.b32.xlu0 %v240, 32
    %v296 = vpop.permute.xlu0 %295
    %297 = vrot.lane.b32.xlu0 %v242, 32
    %v298 = vpop.permute.xlu0 %297
    %299 = vrot.lane.b32.xlu0 %v244, 32
    %v300 = vpop.permute.xlu0 %299
    %301 = vrot.lane.b32.xlu0 %v246, 32
    %v302 = vpop.permute.xlu0 %301
    %303 = vrot.lane.b32.xlu0 %v248, 32
    %v304 = vpop.permute.xlu0 %303
    %305 = vrot.lane.b32.xlu0 %v250, 32
    %v306 = vpop.permute.xlu0 %305
    %vm315 = vcmask 261120
    %v316 = vsel %vm315, %v195, %v292
    %v317 = vsel %vm315, %v198, %v294
    %v318 = vsel %vm315, %v203, %v296
    %v319 = vsel %vm315, %v206, %v298
    %v320 = vsel %vm315, %v211, %v300
    %v321 = vsel %vm315, %v214, %v302
    %v322 = vsel %vm315, %v219, %v304
    %v323 = vsel %vm315, %v222, %v306
    %v324 = vpack.c.bf16 %v317, %v316
    %v325 = vpack.c.bf16 %v319, %v318
    %v326 = vpack.c.bf16 %v321, %v320
    %v327 = vpack.c.bf16 %v323, %v322
    %v328 = vld [vmem:[%s2] sm:$0xf]
    %v329 = vld [vmem:[%s2 + $0x4] sm:$0xf]
    %v330 = vld [vmem:[%s2 + $0x8] sm:$0xf]
    %v331 = vld [vmem:[%s2 + $0xc] sm:$0xf]
    %v332 = vld [vmem:[%s2 + $0x10] sm:$0xf]
    %v333 = vld [vmem:[%s2 + $0x14] sm:$0xf]
    %v334 = vld [vmem:[%s2 + $0x18] sm:$0xf]
    %v335 = vld [vmem:[%s2 + $0x1c] sm:$0xf]
    %v336 = vld [vmem:[%s3] sm:$0x1]
    %v338 = vlaneseq
    %v339 = vshrl.u32 %v338, 7
    %v340 = vsub.s32 0, %v339
    %v341 = vrot.slane %v336, %v340
    %v351 = vunpack.c.l.b16 %v328
    %v352 = vunpack.c.l.b16 %v329
    %v353 = vunpack.c.l.b16 %v330
    %v354 = vunpack.c.l.b16 %v331
    %v355 = vunpack.c.l.b16 %v332
    %v356 = vunpack.c.l.b16 %v333
    %v357 = vunpack.c.l.b16 %v334
    %v358 = vunpack.c.l.b16 %v335
    %v359 = vpack.c.b16 %v352, %v351
    %v360 = vpack.c.b16 %v354, %v353
    %v361 = vpack.c.b16 %v356, %v355
    %v362 = vpack.c.b16 %v358, %v357
    %vm367 = vcmask 523264
    %v369 = vsel %vm367, %v324, 0
    %v372 = vsel %vm367, %v325, 0
    %v375 = vsel %vm367, %v326, 0
    %v378 = vsel %vm367, %v327, 0
    %380 = vmatprep.subr.bf16.mxu0 0
    %381 = vmatpush1.bf16.msra.mxu0 %v359
    %382 = vmatprep.subr.bf16.mxu0 0
    %383 = vmatpush1.bf16.msra.mxu0 %v360
    %384 = vmatprep.subr.bf16.mxu0 0
    %385 = vmatpush1.bf16.msra.mxu0 %v361
    %386 = vmatprep.subr.bf16.mxu0 0
    %387 = vmatpush1.bf16.msra.mxu0 %v362
    %388 = vmatprep.subr.bf16.mxu0 0
    %389 = vmatpush1.bf16.msra.mxu0 0
    %390 = vmatprep.subr.bf16.mxu0 0
    %391 = vmatpush1.bf16.msra.mxu0 0
    %392 = vmatprep.subr.bf16.mxu0 0
    %393 = vmatpush1.bf16.msra.mxu0 0
    %394 = vmatprep.subr.bf16.mxu0 0
    %395 = vmatpush1.bf16.msra.mxu0 0
    %396 = vmatprep.subr.bf16.mxu0 0
    %397 = vmatpush1.bf16.msra.mxu0 0
    %398 = vmatprep.subr.bf16.mxu0 0
    %399 = vmatpush1.bf16.msra.mxu0 0
    %400 = vmatprep.subr.bf16.mxu0 0
    %401 = vmatpush1.bf16.msra.mxu0 0
    %402 = vmatprep.subr.bf16.mxu0 0
    %403 = vmatpush1.bf16.msra.mxu0 0
    %404 = vmatprep.subr.bf16.mxu0 0
    %405 = vmatpush1.bf16.msra.mxu0 0
    %406 = vmatprep.subr.bf16.mxu0 0
    %407 = vmatpush1.bf16.msra.mxu0 0
    %408 = vmatprep.subr.bf16.mxu0 0
    %409 = vmatpush1.bf16.msra.mxu0 0
    %410 = vmatprep.subr.bf16.mxu0 0
    %411 = vmatpush1.bf16.msra.mxu0 0
    %412 = vmatprep.mubr.bf16.mxu0 0
    %413 = vmatmul.mubr.bf16.gmra.mrb[0].mxu0 %v369
    %v414 = vpop.f32.mrb[0].mxu0
    %v415 = vadd.f32 %v341, %v414
    %v416 = vpop.f32.mrb[0].mxu0
    %v417 = vpop.f32.mrb[0].mxu0
    %v418 = vadd.f32 %v341, %v417
    %v419 = vpop.f32.mrb[0].mxu0
    %420 = vmatprep.mubr.bf16.mxu0 0
    %421 = vmatmul.mubr.bf16.gmra.mrb[0].mxu0 %v372
    %v422 = vpop.f32.mrb[0].mxu0
    %v423 = vadd.f32 %v341, %v422
    %v424 = vpop.f32.mrb[0].mxu0
    %v425 = vpop.f32.mrb[0].mxu0
    %v426 = vadd.f32 %v341, %v425
    %v427 = vpop.f32.mrb[0].mxu0
    %428 = vmatprep.mubr.bf16.mxu0 0
    %429 = vmatmul.mubr.bf16.gmra.mrb[0].mxu0 %v375
    %v430 = vpop.f32.mrb[0].mxu0
    %v431 = vadd.f32 %v341, %v430
    %v432 = vpop.f32.mrb[0].mxu0
    %v433 = vpop.f32.mrb[0].mxu0
    %v434 = vadd.f32 %v341, %v433
    %v435 = vpop.f32.mrb[0].mxu0
    %436 = vmatprep.mubr.bf16.mxu0 0
    %437 = vmatmul.mubr.bf16.gmra.mrb[0].mxu0 %v378
    %v438 = vpop.f32.mrb[0].mxu0
    %v439 = vadd.f32 %v341, %v438
    %v440 = vpop.f32.mrb[0].mxu0
    %v441 = vpop.f32.mrb[0].mxu0
    %v442 = vadd.f32 %v341, %v441
    %v443 = vpop.f32.mrb[0].mxu0
    %444 = vdwg.mxu0
    %v445 = vmax.f32 %v415, 0.0
    %v446 = vmax.f32 %v418, 0.0
    %v447 = vmax.f32 %v423, 0.0
    %v448 = vmax.f32 %v426, 0.0
    %v449 = vmax.f32 %v431, 0.0
    %v450 = vmax.f32 %v434, 0.0
    %v451 = vmax.f32 %v439, 0.0
    %v452 = vmax.f32 %v442, 0.0
    %vm453 = vcmp.lt.s32.totalorder %v288, 15
    %vm454 = vcmp.lt.s32.totalorder %v289, 15
    %v455 = vsel %vm453, %v445, -inf
    %v456 = vsel %vm454, %v446, -inf
    %v457 = vsel %vm453, %v447, -inf
    %v458 = vsel %vm454, %v448, -inf
    %v459 = vsel %vm453, %v449, -inf
    %v460 = vsel %vm454, %v450, -inf
    %v461 = vsel %vm453, %v451, -inf
    %v462 = vsel %vm454, %v452, -inf
    %v463 = vsel %vm315, %v455, -inf
    %v464 = vsel %vm315, %v456, -inf
    %v465 = vmax.f32 %v463, %v464
    %v466 = vrot.slane %v465, 4
    %v467 = vmax.f32 %v465, %v466
    %v468 = vrot.slane %v467, 2
    %v469 = vmax.f32 %v467, %v468
    %v470 = vrot.slane %v469, 1
    %v471 = vmax.f32 %v469, %v470
    %v472 = vsel %vm315, %v457, -inf
    %v473 = vsel %vm315, %v458, -inf
    %v474 = vmax.f32 %v472, %v473
    %v475 = vrot.slane %v474, 4
    %v476 = vmax.f32 %v474, %v475
    %v477 = vrot.slane %v476, 2
    %v478 = vmax.f32 %v476, %v477
    %v479 = vrot.slane %v478, 1
    %v480 = vmax.f32 %v478, %v479
    %v481 = vsel %vm315, %v459, -inf
    %v482 = vsel %vm315, %v460, -inf
    %v483 = vmax.f32 %v481, %v482
    %v484 = vrot.slane %v483, 4
    %v485 = vmax.f32 %v483, %v484
    %v486 = vrot.slane %v485, 2
    %v487 = vmax.f32 %v485, %v486
    %v488 = vrot.slane %v487, 1
    %v489 = vmax.f32 %v487, %v488
    %v490 = vsel %vm315, %v461, -inf
    %v491 = vsel %vm315, %v462, -inf
    %v492 = vmax.f32 %v490, %v491
    %v493 = vrot.slane %v492, 4
    %v494 = vmax.f32 %v492, %v493
    %v495 = vrot.slane %v494, 2
    %v496 = vmax.f32 %v494, %v495
    %v497 = vrot.slane %v496, 1
    %v498 = vmax.f32 %v496, %v497
    %500 = vrot.lane.b32.xlu0 %v254, 64
    %v501 = vpop.permute.xlu0 %500
    %502 = vrot.lane.b32.xlu0 %v256, 64
    %v503 = vpop.permute.xlu0 %502
    %504 = vrot.lane.b32.xlu0 %v258, 64
    %v505 = vpop.permute.xlu0 %504
    %506 = vrot.lane.b32.xlu0 %v260, 64
    %v507 = vpop.permute.xlu0 %506
    %508 = vrot.lane.b32.xlu0 %v262, 64
    %v509 = vpop.permute.xlu0 %508
    %510 = vrot.lane.b32.xlu0 %v264, 64
    %v511 = vpop.permute.xlu0 %510
    %512 = vrot.lane.b32.xlu0 %v266, 64
    %v513 = vpop.permute.xlu0 %512
    %514 = vrot.lane.b32.xlu0 %v268, 64
    %v515 = vpop.permute.xlu0 %514
    %v524 = vsel %vm367, %v316, %v501
    %v525 = vsel %vm367, %v317, %v503
    %v526 = vsel %vm367, %v318, %v505
    %v527 = vsel %vm367, %v319, %v507
    %v528 = vsel %vm367, %v320, %v509
    %v529 = vsel %vm367, %v321, %v511
    %v530 = vsel %vm367, %v322, %v513
    %v531 = vsel %vm367, %v323, %v515
    %v532 = vpack.c.bf16 %v525, %v524
    %v533 = vpack.c.bf16 %v527, %v526
    %v534 = vpack.c.bf16 %v529, %v528
    %v535 = vpack.c.bf16 %v531, %v530
    %v536 = vld [vmem:[%s4] sm:$0xf]
    %v537 = vld [vmem:[%s4 + $0x4] sm:$0xf]
    %v538 = vld [vmem:[%s4 + $0x8] sm:$0xf]
    %v539 = vld [vmem:[%s4 + $0xc] sm:$0xf]
    %v540 = vld [vmem:[%s4 + $0x10] sm:$0xf]
    %v541 = vld [vmem:[%s4 + $0x14] sm:$0xf]
    %v542 = vld [vmem:[%s4 + $0x18] sm:$0xf]
    %v543 = vld [vmem:[%s4 + $0x1c] sm:$0xf]
    %v544 = vld [vmem:[%s4 + $0x20] sm:$0xf]
    %v545 = vld [vmem:[%s4 + $0x24] sm:$0xf]
    %v546 = vld [vmem:[%s4 + $0x28] sm:$0xf]
    %v547 = vld [vmem:[%s4 + $0x2c] sm:$0xf]
    %v548 = vld [vmem:[%s5] sm:$0x1]
    %v550 = vlaneseq
    %v551 = vshrl.u32 %v550, 7
    %v552 = vsub.s32 0, %v551
    %v553 = vrot.slane %v548, %v552
    %v567 = vunpack.c.l.b16 %v536
    %v568 = vunpack.c.l.b16 %v537
    %v569 = vunpack.c.l.b16 %v538
    %v570 = vunpack.c.l.b16 %v539
    %v571 = vunpack.c.l.b16 %v540
    %v572 = vunpack.c.l.b16 %v541
    %v573 = vunpack.c.l.b16 %v542
    %v574 = vunpack.c.l.b16 %v543
    %v575 = vunpack.c.l.b16 %v544
    %v576 = vunpack.c.l.b16 %v545
    %v577 = vunpack.c.l.b16 %v546
    %v578 = vunpack.c.l.b16 %v547
    %v579 = vpack.c.b16 %v568, %v567
    %v580 = vpack.c.b16 %v570, %v569
    %v581 = vpack.c.b16 %v572, %v571
    %v582 = vpack.c.b16 %v574, %v573
    %v583 = vpack.c.b16 %v576, %v575
    %v584 = vpack.c.b16 %v578, %v577
    %vm591 = vcmask 785408
    %v593 = vsel %vm591, %v532, 0
    %v596 = vsel %vm591, %v533, 0
    %v599 = vsel %vm591, %v534, 0
    %v602 = vsel %vm591, %v535, 0
    %604 = vmatprep.subr.bf16.mxu0 0
    %605 = vmatpush1.bf16.msra.mxu0 %v579
    %606 = vmatprep.subr.bf16.mxu0 0
    %607 = vmatpush1.bf16.msra.mxu0 %v580
    %608 = vmatprep.subr.bf16.mxu0 0
    %609 = vmatpush1.bf16.msra.mxu0 %v581
    %610 = vmatprep.subr.bf16.mxu0 0
    %611 = vmatpush1.bf16.msra.mxu0 %v582
    %612 = vmatprep.subr.bf16.mxu0 0
    %613 = vmatpush1.bf16.msra.mxu0 %v583
    %614 = vmatprep.subr.bf16.mxu0 0
    %615 = vmatpush1.bf16.msra.mxu0 %v584
    %616 = vmatprep.subr.bf16.mxu0 0
    %617 = vmatpush1.bf16.msra.mxu0 0
    %618 = vmatprep.subr.bf16.mxu0 0
    %619 = vmatpush1.bf16.msra.mxu0 0
    %620 = vmatprep.subr.bf16.mxu0 0
    %621 = vmatpush1.bf16.msra.mxu0 0
    %622 = vmatprep.subr.bf16.mxu0 0
    %623 = vmatpush1.bf16.msra.mxu0 0
    %624 = vmatprep.subr.bf16.mxu0 0
    %625 = vmatpush1.bf16.msra.mxu0 0
    %626 = vmatprep.subr.bf16.mxu0 0
    %627 = vmatpush1.bf16.msra.mxu0 0
    %628 = vmatprep.subr.bf16.mxu0 0
    %629 = vmatpush1.bf16.msra.mxu0 0
    %630 = vmatprep.subr.bf16.mxu0 0
    %631 = vmatpush1.bf16.msra.mxu0 0
    %632 = vmatprep.subr.bf16.mxu0 0
    %633 = vmatpush1.bf16.msra.mxu0 0
    %634 = vmatprep.subr.bf16.mxu0 0
    %635 = vmatpush1.bf16.msra.mxu0 0
    %636 = vmatprep.mubr.bf16.mxu0 0
    %637 = vmatmul.mubr.bf16.gmra.mrb[0].mxu0 %v593
    %v638 = vpop.f32.mrb[0].mxu0
    %v639 = vadd.f32 %v553, %v638
    %v640 = vpop.f32.mrb[0].mxu0
    %v641 = vpop.f32.mrb[0].mxu0
    %v642 = vadd.f32 %v553, %v641
    %v643 = vpop.f32.mrb[0].mxu0
    %644 = vmatprep.mubr.bf16.mxu0 0
    %645 = vmatmul.mubr.bf16.gmra.mrb[0].mxu0 %v596
    %v646 = vpop.f32.mrb[0].mxu0
    %v647 = vadd.f32 %v553, %v646
    %v648 = vpop.f32.mrb[0].mxu0
    %v649 = vpop.f32.mrb[0].mxu0
    %v650 = vadd.f32 %v553, %v649
    %v651 = vpop.f32.mrb[0].mxu0
    %652 = vmatprep.mubr.bf16.mxu0 0
    %653 = vmatmul.mubr.bf16.gmra.mrb[0].mxu0 %v599
    %v654 = vpop.f32.mrb[0].mxu0
    %v655 = vadd.f32 %v553, %v654
    %v656 = vpop.f32.mrb[0].mxu0
    %v657 = vpop.f32.mrb[0].mxu0
    %v658 = vadd.f32 %v553, %v657
    %v659 = vpop.f32.mrb[0].mxu0
    %660 = vmatprep.mubr.bf16.mxu0 0
    %661 = vmatmul.mubr.bf16.gmra.mrb[0].mxu0 %v602
    %v662 = vpop.f32.mrb[0].mxu0
    %v663 = vadd.f32 %v553, %v662
    %v664 = vpop.f32.mrb[0].mxu0
    %v665 = vpop.f32.mrb[0].mxu0
    %v666 = vadd.f32 %v553, %v665
    %v667 = vpop.f32.mrb[0].mxu0
    %668 = vdwg.mxu0
    %v669 = vmax.f32 %v639, 0.0
    %v670 = vmax.f32 %v642, 0.0
    %v671 = vmax.f32 %v647, 0.0
    %v672 = vmax.f32 %v650, 0.0
    %v673 = vmax.f32 %v655, 0.0
    %v674 = vmax.f32 %v658, 0.0
    %v675 = vmax.f32 %v663, 0.0
    %v676 = vmax.f32 %v666, 0.0
    %vm677 = vcmp.lt.s32.totalorder %v288, 14
    %vm678 = vcmp.lt.s32.totalorder %v289, 14
    %v679 = vsel %vm677, %v669, -inf
    %v680 = vsel %vm678, %v670, -inf
    %v681 = vsel %vm677, %v671, -inf
    %v682 = vsel %vm678, %v672, -inf
    %v683 = vsel %vm677, %v673, -inf
    %v684 = vsel %vm678, %v674, -inf
    %v685 = vsel %vm677, %v675, -inf
    %v686 = vsel %vm678, %v676, -inf
    %v687 = vsel %vm315, %v679, -inf
    %v688 = vsel %vm315, %v680, -inf
    %v689 = vmax.f32 %v687, %v688
    %v690 = vrot.slane %v689, 4
    %v691 = vmax.f32 %v689, %v690
    %v692 = vrot.slane %v691, 2
    %v693 = vmax.f32 %v691, %v692
    %v694 = vrot.slane %v693, 1
    %v695 = vmax.f32 %v693, %v694
    %v696 = vsel %vm315, %v681, -inf
    %v697 = vsel %vm315, %v682, -inf
    %v698 = vmax.f32 %v696, %v697
    %v699 = vrot.slane %v698, 4
    %v700 = vmax.f32 %v698, %v699
    %v701 = vrot.slane %v700, 2
    %v702 = vmax.f32 %v700, %v701
    %v703 = vrot.slane %v702, 1
    %v704 = vmax.f32 %v702, %v703
    %v705 = vsel %vm315, %v683, -inf
    %v706 = vsel %vm315, %v684, -inf
    %v707 = vmax.f32 %v705, %v706
    %v708 = vrot.slane %v707, 4
    %v709 = vmax.f32 %v707, %v708
    %v710 = vrot.slane %v709, 2
    %v711 = vmax.f32 %v709, %v710
    %v712 = vrot.slane %v711, 1
    %v713 = vmax.f32 %v711, %v712
    %v714 = vsel %vm315, %v685, -inf
    %v715 = vsel %vm315, %v686, -inf
    %v716 = vmax.f32 %v714, %v715
    %v717 = vrot.slane %v716, 4
    %v718 = vmax.f32 %v716, %v717
    %v719 = vrot.slane %v718, 2
    %v720 = vmax.f32 %v718, %v719
    %v721 = vrot.slane %v720, 1
    %v722 = vmax.f32 %v720, %v721
    %724 = vrot.lane.b32.xlu0 %v272, 96
    %v725 = vpop.permute.xlu0 %724
    %726 = vrot.lane.b32.xlu0 %v274, 96
    %v727 = vpop.permute.xlu0 %726
    %728 = vrot.lane.b32.xlu0 %v276, 96
    %v729 = vpop.permute.xlu0 %728
    %730 = vrot.lane.b32.xlu0 %v278, 96
    %v731 = vpop.permute.xlu0 %730
    %732 = vrot.lane.b32.xlu0 %v280, 96
    %v733 = vpop.permute.xlu0 %732
    %734 = vrot.lane.b32.xlu0 %v282, 96
    %v735 = vpop.permute.xlu0 %734
    %736 = vrot.lane.b32.xlu0 %v284, 96
    %v737 = vpop.permute.xlu0 %736
    %738 = vrot.lane.b32.xlu0 %v286, 96
    %v739 = vpop.permute.xlu0 %738
    %v748 = vsel %vm591, %v524, %v725
    %v749 = vsel %vm591, %v525, %v727
    %v750 = vsel %vm591, %v526, %v729
    %v751 = vsel %vm591, %v527, %v731
    %v752 = vsel %vm591, %v528, %v733
    %v753 = vsel %vm591, %v529, %v735
    %v754 = vsel %vm591, %v530, %v737
    %v755 = vsel %vm591, %v531, %v739
    %v756 = vpack.c.bf16 %v749, %v748
    %v757 = vpack.c.bf16 %v751, %v750
    %v758 = vpack.c.bf16 %v753, %v752
    %v759 = vpack.c.bf16 %v755, %v754
    %v760 = vld [vmem:[%s6] sm:$0xf]
    %v761 = vld [vmem:[%s6 + $0x4] sm:$0xf]
    %v762 = vld [vmem:[%s6 + $0x8] sm:$0xf]
    %v763 = vld [vmem:[%s6 + $0xc] sm:$0xf]
    %v764 = vld [vmem:[%s6 + $0x10] sm:$0xf]
    %v765 = vld [vmem:[%s6 + $0x14] sm:$0xf]
    %v766 = vld [vmem:[%s6 + $0x18] sm:$0xf]
    %v767 = vld [vmem:[%s6 + $0x1c] sm:$0xf]
    %v768 = vld [vmem:[%s6 + $0x20] sm:$0xf]
    %v769 = vld [vmem:[%s6 + $0x24] sm:$0xf]
    %v770 = vld [vmem:[%s6 + $0x28] sm:$0xf]
    %v771 = vld [vmem:[%s6 + $0x2c] sm:$0xf]
    %v772 = vld [vmem:[%s6 + $0x30] sm:$0xf]
    %v773 = vld [vmem:[%s6 + $0x34] sm:$0xf]
    %v774 = vld [vmem:[%s6 + $0x38] sm:$0xf]
    %v775 = vld [vmem:[%s6 + $0x3c] sm:$0xf]
    %v776 = vld [vmem:[%s7] sm:$0x1]
    %v778 = vlaneseq
    %v779 = vshrl.u32 %v778, 7
    %v780 = vsub.s32 0, %v779
    %v781 = vrot.slane %v776, %v780
    %v799 = vunpack.c.l.b16 %v760
    %v800 = vunpack.c.l.b16 %v761
    %v801 = vunpack.c.l.b16 %v762
    %v802 = vunpack.c.l.b16 %v763
    %v803 = vunpack.c.l.b16 %v764
    %v804 = vunpack.c.l.b16 %v765
    %v805 = vunpack.c.l.b16 %v766
    %v806 = vunpack.c.l.b16 %v767
    %v807 = vunpack.c.l.b16 %v768
    %v808 = vunpack.c.l.b16 %v769
    %v809 = vunpack.c.l.b16 %v770
    %v810 = vunpack.c.l.b16 %v771
    %v811 = vunpack.c.l.b16 %v772
    %v812 = vunpack.c.l.b16 %v773
    %v813 = vunpack.c.l.b16 %v774
    %v814 = vunpack.c.l.b16 %v775
    %v815 = vpack.c.b16 %v800, %v799
    %v816 = vpack.c.b16 %v802, %v801
    %v817 = vpack.c.b16 %v804, %v803
    %v818 = vpack.c.b16 %v806, %v805
    %v819 = vpack.c.b16 %v808, %v807
    %v820 = vpack.c.b16 %v810, %v809
    %v821 = vpack.c.b16 %v812, %v811
    %v822 = vpack.c.b16 %v814, %v813
    %831 = vmatprep.subr.bf16.mxu0 0
    %832 = vmatpush1.bf16.msra.mxu0 %v815
    %833 = vmatprep.subr.bf16.mxu0 0
    %834 = vmatpush1.bf16.msra.mxu0 %v816
    %835 = vmatprep.subr.bf16.mxu0 0
    %836 = vmatpush1.bf16.msra.mxu0 %v817
    %837 = vmatprep.subr.bf16.mxu0 0
    %838 = vmatpush1.bf16.msra.mxu0 %v818
    %839 = vmatprep.subr.bf16.mxu0 0
    %840 = vmatpush1.bf16.msra.mxu0 %v819
    %841 = vmatprep.subr.bf16.mxu0 0
    %842 = vmatpush1.bf16.msra.mxu0 %v820
    %843 = vmatprep.subr.bf16.mxu0 0
    %844 = vmatpush1.bf16.msra.mxu0 %v821
    %845 = vmatprep.subr.bf16.mxu0 0
    %846 = vmatpush1.bf16.msra.mxu0 %v822
    %847 = vmatprep.subr.bf16.mxu0 0
    %848 = vmatpush1.bf16.msra.mxu0 0
    %849 = vmatprep.subr.bf16.mxu0 0
    %850 = vmatpush1.bf16.msra.mxu0 0
    %851 = vmatprep.subr.bf16.mxu0 0
    %852 = vmatpush1.bf16.msra.mxu0 0
    %853 = vmatprep.subr.bf16.mxu0 0
    %854 = vmatpush1.bf16.msra.mxu0 0
    %855 = vmatprep.subr.bf16.mxu0 0
    %856 = vmatpush1.bf16.msra.mxu0 0
    %857 = vmatprep.subr.bf16.mxu0 0
    %858 = vmatpush1.bf16.msra.mxu0 0
    %859 = vmatprep.subr.bf16.mxu0 0
    %860 = vmatpush1.bf16.msra.mxu0 0
    %861 = vmatprep.subr.bf16.mxu0 0
    %862 = vmatpush1.bf16.msra.mxu0 0
    %863 = vmatprep.mubr.bf16.mxu0 0
    %864 = vmatmul.mubr.bf16.gmra.mrb[0].mxu0 %v756
    %v865 = vpop.f32.mrb[0].mxu0
    %v866 = vadd.f32 %v781, %v865
    %v867 = vpop.f32.mrb[0].mxu0
    %v868 = vpop.f32.mrb[0].mxu0
    %v869 = vadd.f32 %v781, %v868
    %v870 = vpop.f32.mrb[0].mxu0
    %871 = vmatprep.mubr.bf16.mxu0 0
    %872 = vmatmul.mubr.bf16.gmra.mrb[0].mxu0 %v757
    %v873 = vpop.f32.mrb[0].mxu0
    %v874 = vadd.f32 %v781, %v873
    %v875 = vpop.f32.mrb[0].mxu0
    %v876 = vpop.f32.mrb[0].mxu0
    %v877 = vadd.f32 %v781, %v876
    %v878 = vpop.f32.mrb[0].mxu0
    %879 = vmatprep.mubr.bf16.mxu0 0
    %880 = vmatmul.mubr.bf16.gmra.mrb[0].mxu0 %v758
    %v881 = vpop.f32.mrb[0].mxu0
    %v882 = vadd.f32 %v781, %v881
    %v883 = vpop.f32.mrb[0].mxu0
    %v884 = vpop.f32.mrb[0].mxu0
    %v885 = vadd.f32 %v781, %v884
    %v886 = vpop.f32.mrb[0].mxu0
    %887 = vmatprep.mubr.bf16.mxu0 0
    %888 = vmatmul.mubr.bf16.gmra.mrb[0].mxu0 %v759
    %v889 = vpop.f32.mrb[0].mxu0
    %v890 = vadd.f32 %v781, %v889
    %v891 = vpop.f32.mrb[0].mxu0
    %v892 = vpop.f32.mrb[0].mxu0
    %v893 = vadd.f32 %v781, %v892
    %v894 = vpop.f32.mrb[0].mxu0
    %895 = vdwg.mxu0
    %v896 = vmax.f32 %v866, 0.0
    %v897 = vmax.f32 %v869, 0.0
    %v898 = vmax.f32 %v874, 0.0
    %v899 = vmax.f32 %v877, 0.0
    %v900 = vmax.f32 %v882, 0.0
    %v901 = vmax.f32 %v885, 0.0
    %v902 = vmax.f32 %v890, 0.0
    %v903 = vmax.f32 %v893, 0.0
    %vm904 = vcmp.lt.s32.totalorder %v288, 13
    %vm905 = vcmp.lt.s32.totalorder %v289, 13
    %v906 = vsel %vm904, %v896, -inf
    %v907 = vsel %vm905, %v897, -inf
    %v908 = vsel %vm904, %v898, -inf
    %v909 = vsel %vm905, %v899, -inf
    %v910 = vsel %vm904, %v900, -inf
    %v911 = vsel %vm905, %v901, -inf
    %v912 = vsel %vm904, %v902, -inf
    %v913 = vsel %vm905, %v903, -inf
    %v914 = vsel %vm315, %v906, -inf
    %v915 = vsel %vm315, %v907, -inf
    %v916 = vmax.f32 %v914, %v915
    %v917 = vrot.slane %v916, 4
    %v918 = vmax.f32 %v916, %v917
    %v919 = vrot.slane %v918, 2
    %v920 = vmax.f32 %v918, %v919
    %v921 = vrot.slane %v920, 1
    %v922 = vmax.f32 %v920, %v921
    %v923 = vsel %vm315, %v908, -inf
    %v924 = vsel %vm315, %v909, -inf
    %v925 = vmax.f32 %v923, %v924
    %v926 = vrot.slane %v925, 4
    %v927 = vmax.f32 %v925, %v926
    %v928 = vrot.slane %v927, 2
    %v929 = vmax.f32 %v927, %v928
    %v930 = vrot.slane %v929, 1
    %v931 = vmax.f32 %v929, %v930
    %v932 = vsel %vm315, %v910, -inf
    %v933 = vsel %vm315, %v911, -inf
    %v934 = vmax.f32 %v932, %v933
    %v935 = vrot.slane %v934, 4
    %v936 = vmax.f32 %v934, %v935
    %v937 = vrot.slane %v936, 2
    %v938 = vmax.f32 %v936, %v937
    %v939 = vrot.slane %v938, 1
    %v940 = vmax.f32 %v938, %v939
    %v941 = vsel %vm315, %v912, -inf
    %v942 = vsel %vm315, %v913, -inf
    %v943 = vmax.f32 %v941, %v942
    %v944 = vrot.slane %v943, 4
    %v945 = vmax.f32 %v943, %v944
    %v946 = vrot.slane %v945, 2
    %v947 = vmax.f32 %v945, %v946
    %v948 = vrot.slane %v947, 1
    %v949 = vmax.f32 %v947, %v948
    %vm954 = vcmask 1041409
    %v955 = vsel %vm954, %v480, %v471
    %vm956 = vcmask 1042434
    %v957 = vsel %vm956, %v489, %v955
    %vm958 = vcmask 1043459
    %v959 = vsel %vm958, %v498, %v957
    %v965 = vsel %vm954, %v704, %v695
    %v966 = vsel %vm956, %v713, %v965
    %v967 = vsel %vm958, %v722, %v966
    %968 = vrot.lane.b32.xlu0 %v967, 32
    %v969 = vpop.permute.xlu0 %968
    %v975 = vsel %vm954, %v931, %v922
    %v976 = vsel %vm956, %v940, %v975
    %v977 = vsel %vm958, %v949, %v976
    %978 = vrot.lane.b32.xlu0 %v977, 64
    %v979 = vpop.permute.xlu0 %978
    %v981 = vsel %vm315, %v959, %v969
    %v982 = vsel %vm367, %v981, %v979
    %v983 = vpack.c.bf16 %v982, %v982
    %v984 = vld [vmem:[%s8] sm:$0xf]
    %v985 = vld [vmem:[%s8 + $0x4] sm:$0xf]
    %v986 = vld [vmem:[%s8 + $0x8] sm:$0xf]
    %v987 = vld [vmem:[%s8 + $0xc] sm:$0xf]
    %v988 = vld [vmem:[%s8 + $0x10] sm:$0xf]
    %v989 = vld [vmem:[%s8 + $0x14] sm:$0xf]
    %v990 = vld [vmem:[%s8 + $0x18] sm:$0xf]
    %v991 = vld [vmem:[%s8 + $0x1c] sm:$0xf]
    %v992 = vld [vmem:[%s8 + $0x20] sm:$0xf]
    %v993 = vld [vmem:[%s8 + $0x24] sm:$0xf]
    %v994 = vld [vmem:[%s8 + $0x28] sm:$0xf]
    %v995 = vld [vmem:[%s8 + $0x2c] sm:$0xf]
    %v996 = vld [vmem:[%s9] sm:$0x1]
    %v998 = vlaneseq
    %v999 = vshrl.u32 %v998, 7
    %v1000 = vsub.s32 0, %v999
    %v1001 = vrot.slane %v996, %v1000
    %v1015 = vunpack.c.l.b16 %v984
    %v1016 = vunpack.c.l.b16 %v985
    %v1017 = vunpack.c.l.b16 %v986
    %v1018 = vunpack.c.l.b16 %v987
    %v1019 = vunpack.c.l.b16 %v988
    %v1020 = vunpack.c.l.b16 %v989
    %v1021 = vunpack.c.l.b16 %v990
    %v1022 = vunpack.c.l.b16 %v991
    %v1023 = vunpack.c.l.b16 %v992
    %v1024 = vunpack.c.l.b16 %v993
    %v1025 = vunpack.c.l.b16 %v994
    %v1026 = vunpack.c.l.b16 %v995
    %v1027 = vpack.c.b16 %v1016, %v1015
    %v1028 = vpack.c.b16 %v1018, %v1017
    %v1029 = vpack.c.b16 %v1020, %v1019
    %v1030 = vpack.c.b16 %v1022, %v1021
    %v1031 = vpack.c.b16 %v1024, %v1023
    %v1032 = vpack.c.b16 %v1026, %v1025
    %v1040 = vsel %vm591, %v983, 0
    %1042 = vmatprep.subr.bf16.mxu0 0
    %1043 = vmatpush1.bf16.msra.mxu0 %v1027
    %1044 = vmatprep.subr.bf16.mxu0 0
    %1045 = vmatpush1.bf16.msra.mxu0 %v1028
    %1046 = vmatprep.subr.bf16.mxu0 0
    %1047 = vmatpush1.bf16.msra.mxu0 %v1029
    %1048 = vmatprep.subr.bf16.mxu0 0
    %1049 = vmatpush1.bf16.msra.mxu0 %v1030
    %1050 = vmatprep.subr.bf16.mxu0 0
    %1051 = vmatpush1.bf16.msra.mxu0 %v1031
    %1052 = vmatprep.subr.bf16.mxu0 0
    %1053 = vmatpush1.bf16.msra.mxu0 %v1032
    %1054 = vmatprep.subr.bf16.mxu0 0
    %1055 = vmatpush1.bf16.msra.mxu0 0
    %1056 = vmatprep.subr.bf16.mxu0 0
    %1057 = vmatpush1.bf16.msra.mxu0 0
    %1058 = vmatprep.subr.bf16.mxu0 0
    %1059 = vmatpush1.bf16.msra.mxu0 0
    %1060 = vmatprep.subr.bf16.mxu0 0
    %1061 = vmatpush1.bf16.msra.mxu0 0
    %1062 = vmatprep.subr.bf16.mxu0 0
    %1063 = vmatpush1.bf16.msra.mxu0 0
    %1064 = vmatprep.subr.bf16.mxu0 0
    %1065 = vmatpush1.bf16.msra.mxu0 0
    %1066 = vmatprep.subr.bf16.mxu0 0
    %1067 = vmatpush1.bf16.msra.mxu0 0
    %1068 = vmatprep.subr.bf16.mxu0 0
    %1069 = vmatpush1.bf16.msra.mxu0 0
    %1070 = vmatprep.subr.bf16.mxu0 0
    %1071 = vmatpush1.bf16.msra.mxu0 0
    %1072 = vmatprep.subr.bf16.mxu0 0
    %1073 = vmatpush1.bf16.msra.mxu0 0
    %1074 = vmatprep.mubr.bf16.mxu0 0
    %1075 = vmatmul.mubr.bf16.gmra.mrb[0].mxu0 %v1040
    %v1076 = vpop.f32.mrb[0].mxu0
    %v1077 = vadd.f32 %v1001, %v1076
    %v1078 = vpop.f32.mrb[0].mxu0
    %v1079 = vpop.f32.mrb[0].mxu0
    %v1080 = vpop.f32.mrb[0].mxu0
    %1081 = vdwg.mxu0
    %vm1082 = vcmask 27648
    %1083 = vst.msk [vmem:[#allocation2] sm:$0xf] %vm1082, %v1077
    // Predicated region
    $region42: #{tpu_custom_call.1} parent=1 // pred_check
      _
    $region43: #{tpu_custom_call.1} parent=1 // pred_check_branch
      %1085 = sbr.rel (0) target = $region45
    $region44: #{tpu_custom_call.1} parent=1 // pred_region
      %s1087 = ssub.s32 64, 64
      %1088 = vsyncadd [#allocation3], %s1087
      %s1090 = sshll.u32 [#allocation2], 4
      %s1091 = int_to_ptr.vmem [resolvable:$true] %s1090
      %1093 = dma.vmem_to_hbm [thread:$0]  %s1091, 64, %s10, [#allocation3]
    $region45: #{tpu_custom_call.1} parent=1 // pred_fallthru
      _
    // Predicated region
    $region46: #{tpu_custom_call.1} parent=1 // pred_check
      _
    $region47: #{tpu_custom_call.1} parent=1 // pred_check_branch
      %1095 = sbr.rel (0) target = $region49
    $region48: #{tpu_custom_call.1} parent=1 // pred_region
      %1096 = dma.done [#allocation3], 64
    $region49: #{tpu_custom_call.1} parent=1 // pred_fallthru
      _
    %1097 = vsyncpa [#allocation3], 1

</llo_original>
